<compile_context>
chip_gen: v6e
topology: v6e:2x2x1
jax: 0.10.0
libtpu: 0.0.40
codegen_flags: <defaults>
</compile_context>

<pallas_src>
import functools

import jax
import jax.numpy as jnp
from jax.experimental import pallas as pl
from jax.experimental.pallas import tpu as pltpu

LANE = 128      # pad N (output-feature) dims to multiples of this
SUBLANE = 8     # row-tile granularity


def _round_up(x, m):
    return ((x + m - 1) // m) * m


# ---------------------------------------------------------------------------
# Kernel: one row-tile of fused (split-)concat + 3-layer MLP
# ---------------------------------------------------------------------------
def _concat_mlp_kernel(x0_ref, x1_ref,
                       w0a_ref, w0b_ref, b0_ref,
                       w1_ref, b1_ref,
                       w2_ref, b2_ref,
                       out_ref):
    mxu_dtype = w0a_ref.dtype

    # Layer 0: concat(x0, x1) @ w0 == x0 @ w0a + x1 @ w0b   (pure MXU, no concat)
    h = (jnp.dot(x0_ref[...].astype(mxu_dtype), w0a_ref[...],
                 preferred_element_type=jnp.float32)
         + jnp.dot(x1_ref[...].astype(mxu_dtype), w0b_ref[...],
                   preferred_element_type=jnp.float32)
         + b0_ref[...])
    h = jnp.maximum(h, 0.0)                     # relu in f32; dropout=0 -> identity

    # Layer 1: Linear + relu
    h = jnp.dot(h.astype(mxu_dtype), w1_ref[...],
                preferred_element_type=jnp.float32) + b1_ref[...]
    h = jnp.maximum(h, 0.0)

    # Layer 2 (output): Linear only
    out = jnp.dot(h.astype(mxu_dtype), w2_ref[...],
                  preferred_element_type=jnp.float32) + b2_ref[...]
    out_ref[...] = out.astype(out_ref.dtype)


# ---------------------------------------------------------------------------
# One-time parameter preparation: split w0 along the concat axis, zero-pad all
# output-feature dims to multiples of 128, cast matmul operands to bf16.
# ---------------------------------------------------------------------------
def prepare_concat_mlp_params(params, feat0, use_bf16=True):
    w0, b0 = params["w0"], params["b0"]
    w1, b1 = params["w1"], params["b1"]
    w2, b2 = params["w2"], params["b2"]

    d0, d1, d_out = w0.shape[1], w1.shape[1], w2.shape[1]
    d0p = _round_up(d0, LANE)
    d1p = _round_up(d1, LANE)
    doutp = _round_up(d_out, LANE)

    mxu_dtype = jnp.bfloat16 if use_bf16 else w0.dtype

    def pad2(a, rows_to, cols_to):
        r, c = a.shape
        return jnp.pad(a, ((0, rows_to - r), (0, cols_to - c)))

    return {
        "w0a": pad2(w0[:feat0], feat0, d0p).astype(mxu_dtype),
        "w0b": pad2(w0[feat0:], w0.shape[0] - feat0, d0p).astype(mxu_dtype),
        "b0": pad2(b0, 1, d0p).astype(jnp.float32),
        "w1": pad2(w1, d0p, d1p).astype(mxu_dtype),
        "b1": pad2(b1, 1, d1p).astype(jnp.float32),
        "w2": pad2(w2, d1p, doutp).astype(mxu_dtype),
        "b2": pad2(b2, 1, doutp).astype(jnp.float32),
    }


# ---------------------------------------------------------------------------
# Forward wrapper
# ---------------------------------------------------------------------------
@functools.partial(jax.jit, static_argnames=("output_dim", "tile_m"))
def concat_mlp_forward(input_0, input_1, prepped, output_dim, tile_m=256):
    # torch dim-mismatch branch: `input.unsqueeze(1).reshape_as(other)`.
    # torch's reshape_as requires matching element counts (it does NOT broadcast),
    # which is exactly jnp.reshape's semantics, so this is faithful to the module.
    if input_0.ndim == 3 and input_1.ndim == 2:
        input_1 = jnp.reshape(input_1[:, None, :], input_0.shape)
    if input_1.ndim == 3 and input_0.ndim == 2:
        input_0 = jnp.reshape(input_0[:, None, :], input_1.shape)

    lead_shape = input_0.shape[:-1]
    x0 = jnp.reshape(input_0, (-1, input_0.shape[-1]))
    x1 = jnp.reshape(input_1, (-1, input_1.shape[-1]))
    rows, feat0 = x0.shape
    feat1 = x1.shape[1]

    w0a, w0b, b0 = prepped["w0a"], prepped["w0b"], prepped["b0"]
    w1, b1 = prepped["w1"], prepped["b1"]
    w2, b2 = prepped["w2"], prepped["b2"]
    d0p, d1p, doutp = w0a.shape[1], w1.shape[1], w2.shape[1]

    assert tile_m % SUBLANE == 0, "tile_m must be a multiple of 8"
    tile_rows = min(tile_m, _round_up(rows, SUBLANE))
    grid = (pl.cdiv(rows, tile_rows),)

    # Output dtype follows the inputs (no silent f32 up-cast for bf16 inputs).
    out_dtype = jnp.result_type(input_0.dtype, input_1.dtype)

    nbytes = lambda a: a.size * a.dtype.itemsize
    flops = 2 * rows * (feat0 * d0p + feat1 * d0p + d0p * d1p + d1p * doutp)
    bytes_accessed = (nbytes(x0) + nbytes(x1)
                      + sum(nbytes(a) for a in (w0a, w0b, b0, w1, b1, w2, b2))
                      + rows * doutp * jnp.dtype(out_dtype).itemsize)

    def row_spec(feat):
        return pl.BlockSpec((tile_rows, feat), lambda i: (i, 0))

    def const_spec(a):
        # Weights/biases: same block every grid step -> stay resident in VMEM.
        return pl.BlockSpec(a.shape, lambda i: (0, 0))

    out = pl.pallas_call(
        _concat_mlp_kernel,
        grid=grid,
        in_specs=[
            row_spec(feat0), row_spec(feat1),
            const_spec(w0a), const_spec(w0b), const_spec(b0),
            const_spec(w1), const_spec(b1),
            const_spec(w2), const_spec(b2),
        ],
        out_specs=pl.BlockSpec((tile_rows, doutp), lambda i: (i, 0)),
        out_shape=jax.ShapeDtypeStruct((rows, doutp), out_dtype),
        compiler_params=pltpu.CompilerParams(
            dimension_semantics=("parallel",)),
        cost_estimate=pl.CostEstimate(
            flops=flops, transcendentals=0, bytes_accessed=bytes_accessed),
    )(x0, x1, w0a, w0b, b0, w1, b1, w2, b2)

    out = out[:, :output_dim]                     # drop the lane padding
    return jnp.reshape(out, lead_shape + (output_dim,))


# ---------------------------------------------------------------------------
# Synthetic parameter init (mirrors nn.Linear shapes; weights stored (in, out))
# ---------------------------------------------------------------------------
def init_concat_mlp_params(key, input_dims, dimensions, output_dim):
    dims = list(dimensions) + [output_dim]
    in_dim = sum(input_dims)
    sizes = [in_dim] + dims
    params = {}
    for idx, (din, dout) in enumerate(zip(sizes[:-1], sizes[1:])):
        key, kw, kb = jax.random.split(key, 3)
        bound = 1.0 / jnp.sqrt(din)
        params[f"w{idx}"] = jax.random.uniform(
            kw, (din, dout), jnp.float32, minval=-bound, maxval=bound)
        params[f"b{idx}"] = jax.random.uniform(
            kb, (1, dout), jnp.float32, minval=-bound, maxval=bound)
    return params


if __name__ == "__main__":
    # Small shapes consistent with the module's forward:
    #   input_0: (batch, feat0), input_1: (batch, feat1)
    batch, feat0, feat1 = 48, 32, 32
    dimensions = [64, 64]          # intermediate MLP dims (module default: [500, 500])
    output_dim = 32

    key = jax.random.PRNGKey(0)
    k0, k1, kp = jax.random.split(key, 3)
    input_0 = jax.random.normal(k0, (batch, feat0), jnp.float32)
    input_1 = jax.random.normal(k1, (batch, feat1), jnp.float32)

    params = init_concat_mlp_params(kp, (feat0, feat1), dimensions, output_dim)
    prepped = prepare_concat_mlp_params(params, feat0, use_bf16=True)

    # tile_m=16 exercises the multi-tile row grid at these tiny shapes;
    # the production default is 256-512 rows per tile.
    out = concat_mlp_forward(input_0, input_1, prepped, output_dim, tile_m=16)
    jax.block_until_ready(out)

    # Pure-JAX f32 reference of the original module math.
    z = jnp.concatenate([input_0, input_1], axis=-1)
    h = jnp.maximum(z @ params["w0"] + params["b0"], 0.0)
    h = jnp.maximum(h @ params["w1"] + params["b1"], 0.0)
    ref = h @ params["w2"] + params["b2"]

    assert out.shape == (batch, output_dim)
    # Tolerance accounts for bf16 matmul operands (f32 accumulation).
    assert jnp.allclose(out, ref, atol=2e-2, rtol=2e-2), float(
        jnp.max(jnp.abs(out - ref)))

    print("KERNEL_OK")
</pallas_src>

<mosaic_0001>
module attributes {stable_mosaic.version = 11 : i64} {
  func.func @_concat_mlp_kernel(%arg0: i32, %arg1: memref<16x32xf32, #tpu.memory_space<vmem>>, %arg2: memref<16x32xf32, #tpu.memory_space<vmem>>, %arg3: memref<32x128xbf16, #tpu.memory_space<vmem>>, %arg4: memref<32x128xbf16, #tpu.memory_space<vmem>>, %arg5: memref<1x128xf32, #tpu.memory_space<vmem>>, %arg6: memref<128x128xbf16, #tpu.memory_space<vmem>>, %arg7: memref<1x128xf32, #tpu.memory_space<vmem>>, %arg8: memref<128x128xbf16, #tpu.memory_space<vmem>>, %arg9: memref<1x128xf32, #tpu.memory_space<vmem>>, %arg10: memref<16x128xf32, #tpu.memory_space<vmem>>) attributes {dimension_semantics = [#tpu.dimension_semantics<parallel>], iteration_bounds = array<i64: 3>, scalar_prefetch = 0 : i64, scratch_operands = 0 : i64, tpu.core_type = #tpu.core_type<tc>, window_params = [{transform_indices = @transform_0, window_bounds = array<i64: 16, 32>}, {transform_indices = @transform_1, window_bounds = array<i64: 16, 32>}, {pipeline_mode = #tpu.pipeline_mode<synchronous>, transform_indices = @transform_2, window_bounds = array<i64: 32, 128>}, {pipeline_mode = #tpu.pipeline_mode<synchronous>, transform_indices = @transform_3, window_bounds = array<i64: 32, 128>}, {pipeline_mode = #tpu.pipeline_mode<synchronous>, transform_indices = @transform_4, window_bounds = array<i64: 1, 128>}, {pipeline_mode = #tpu.pipeline_mode<synchronous>, transform_indices = @transform_5, window_bounds = array<i64: 128, 128>}, {pipeline_mode = #tpu.pipeline_mode<synchronous>, transform_indices = @transform_6, window_bounds = array<i64: 1, 128>}, {pipeline_mode = #tpu.pipeline_mode<synchronous>, transform_indices = @transform_7, window_bounds = array<i64: 128, 128>}, {pipeline_mode = #tpu.pipeline_mode<synchronous>, transform_indices = @transform_8, window_bounds = array<i64: 1, 128>}, {transform_indices = @transform_9, window_bounds = array<i64: 16, 128>}]} {
    %c0 = arith.constant 0 : index
    %c0_0 = arith.constant 0 : index
    %0 = vector.load %arg1[%c0, %c0_0] : memref<16x32xf32, #tpu.memory_space<vmem>>, vector<16x32xf32>
    %1 = arith.truncf %0 : vector<16x32xf32> to vector<16x32xbf16>
    %c0_1 = arith.constant 0 : index
    %c0_2 = arith.constant 0 : index
    %2 = vector.load %arg3[%c0_1, %c0_2] : memref<32x128xbf16, #tpu.memory_space<vmem>>, vector<32x128xbf16>
    %cst = arith.constant dense<0.000000e+00> : vector<16x128xf32>
    %3 = tpu.matmul %1, %2, %cst {dimension_numbers = #tpu.dot_dimension_numbers<[1], [0], [0], [1], [0, 0, 1, 1], [], []>} : vector<16x32xbf16>, vector<32x128xbf16>, vector<16x128xf32> -> vector<16x128xf32>
    %c0_3 = arith.constant 0 : index
    %c0_4 = arith.constant 0 : index
    %4 = vector.load %arg2[%c0_3, %c0_4] : memref<16x32xf32, #tpu.memory_space<vmem>>, vector<16x32xf32>
    %5 = arith.truncf %4 : vector<16x32xf32> to vector<16x32xbf16>
    %c0_5 = arith.constant 0 : index
    %c0_6 = arith.constant 0 : index
    %6 = vector.load %arg4[%c0_5, %c0_6] : memref<32x128xbf16, #tpu.memory_space<vmem>>, vector<32x128xbf16>
    %cst_7 = arith.constant dense<0.000000e+00> : vector<16x128xf32>
    %7 = tpu.matmul %5, %6, %cst_7 {dimension_numbers = #tpu.dot_dimension_numbers<[1], [0], [0], [1], [0, 0, 1, 1], [], []>} : vector<16x32xbf16>, vector<32x128xbf16>, vector<16x128xf32> -> vector<16x128xf32>
    %8 = arith.addf %3, %7 : vector<16x128xf32>
    %c0_8 = arith.constant 0 : index
    %c0_9 = arith.constant 0 : index
    %9 = vector.load %arg5[%c0_8, %c0_9] : memref<1x128xf32, #tpu.memory_space<vmem>>, vector<1x128xf32>
    %10 = vector.broadcast %9 : vector<1x128xf32> to vector<16x128xf32>
    %11 = arith.addf %8, %10 : vector<16x128xf32>
    %cst_10 = arith.constant 0.000000e+00 : f32
    %12 = vector.broadcast %cst_10 : f32 to vector<16x128xf32>
    %13 = arith.maximumf %11, %12 : vector<16x128xf32>
    %14 = arith.truncf %13 : vector<16x128xf32> to vector<16x128xbf16>
    %c0_11 = arith.constant 0 : index
    %c0_12 = arith.constant 0 : index
    %15 = vector.load %arg6[%c0_11, %c0_12] : memref<128x128xbf16, #tpu.memory_space<vmem>>, vector<128x128xbf16>
    %cst_13 = arith.constant dense<0.000000e+00> : vector<16x128xf32>
    %16 = tpu.matmul %14, %15, %cst_13 {dimension_numbers = #tpu.dot_dimension_numbers<[1], [0], [0], [1], [0, 0, 1, 1], [], []>} : vector<16x128xbf16>, vector<128x128xbf16>, vector<16x128xf32> -> vector<16x128xf32>
    %c0_14 = arith.constant 0 : index
    %c0_15 = arith.constant 0 : index
    %17 = vector.load %arg7[%c0_14, %c0_15] : memref<1x128xf32, #tpu.memory_space<vmem>>, vector<1x128xf32>
    %18 = vector.broadcast %17 : vector<1x128xf32> to vector<16x128xf32>
    %19 = arith.addf %16, %18 : vector<16x128xf32>
    %cst_16 = arith.constant 0.000000e+00 : f32
    %20 = vector.broadcast %cst_16 : f32 to vector<16x128xf32>
    %21 = arith.maximumf %19, %20 : vector<16x128xf32>
    %22 = arith.truncf %21 : vector<16x128xf32> to vector<16x128xbf16>
    %c0_17 = arith.constant 0 : index
    %c0_18 = arith.constant 0 : index
    %23 = vector.load %arg8[%c0_17, %c0_18] : memref<128x128xbf16, #tpu.memory_space<vmem>>, vector<128x128xbf16>
    %cst_19 = arith.constant dense<0.000000e+00> : vector<16x128xf32>
    %24 = tpu.matmul %22, %23, %cst_19 {dimension_numbers = #tpu.dot_dimension_numbers<[1], [0], [0], [1], [0, 0, 1, 1], [], []>} : vector<16x128xbf16>, vector<128x128xbf16>, vector<16x128xf32> -> vector<16x128xf32>
    %c0_20 = arith.constant 0 : index
    %c0_21 = arith.constant 0 : index
    %25 = vector.load %arg9[%c0_20, %c0_21] : memref<1x128xf32, #tpu.memory_space<vmem>>, vector<1x128xf32>
    %26 = vector.broadcast %25 : vector<1x128xf32> to vector<16x128xf32>
    %27 = arith.addf %24, %26 : vector<16x128xf32>
    %c0_22 = arith.constant 0 : index
    %c0_23 = arith.constant 0 : index
    %28 = vector.load %arg10[%c0_22, %c0_23] : memref<16x128xf32, #tpu.memory_space<vmem>>, vector<16x128xf32>
    tpu.vector_store %arg10[%c0_22, %c0_23], %27 {strides = array<i32>} : memref<16x128xf32, #tpu.memory_space<vmem>>, vector<16x128xf32>,
    return
  }
  func.func @transform_0(%arg0: i32) -> (i32, i32) {
    %c0_i32 = arith.constant 0 : i32
    %c0_i32_0 = arith.constant 0 : i32
    return %arg0, %c0_i32 : i32, i32
  }
  func.func @transform_1(%arg0: i32) -> (i32, i32) {
    %c0_i32 = arith.constant 0 : i32
    %c0_i32_0 = arith.constant 0 : i32
    return %arg0, %c0_i32 : i32, i32
  }
  func.func @transform_2(%arg0: i32) -> (i32, i32) {
    %c0_i32 = arith.constant 0 : i32
    %c0_i32_0 = arith.constant 0 : i32
    %c0_i32_1 = arith.constant 0 : i32
    return %c0_i32, %c0_i32_0 : i32, i32
  }
  func.func @transform_3(%arg0: i32) -> (i32, i32) {
    %c0_i32 = arith.constant 0 : i32
    %c0_i32_0 = arith.constant 0 : i32
    %c0_i32_1 = arith.constant 0 : i32
    return %c0_i32, %c0_i32_0 : i32, i32
  }
  func.func @transform_4(%arg0: i32) -> (i32, i32) {
    %c0_i32 = arith.constant 0 : i32
    %c0_i32_0 = arith.constant 0 : i32
    %c0_i32_1 = arith.constant 0 : i32
    return %c0_i32, %c0_i32_0 : i32, i32
  }
  func.func @transform_5(%arg0: i32) -> (i32, i32) {
    %c0_i32 = arith.constant 0 : i32
    %c0_i32_0 = arith.constant 0 : i32
    %c0_i32_1 = arith.constant 0 : i32
    return %c0_i32, %c0_i32_0 : i32, i32
  }
  func.func @transform_6(%arg0: i32) -> (i32, i32) {
    %c0_i32 = arith.constant 0 : i32
    %c0_i32_0 = arith.constant 0 : i32
    %c0_i32_1 = arith.constant 0 : i32
    return %c0_i32, %c0_i32_0 : i32, i32
  }
  func.func @transform_7(%arg0: i32) -> (i32, i32) {
    %c0_i32 = arith.constant 0 : i32
    %c0_i32_0 = arith.constant 0 : i32
    %c0_i32_1 = arith.constant 0 : i32
    return %c0_i32, %c0_i32_0 : i32, i32
  }
  func.func @transform_8(%arg0: i32) -> (i32, i32) {
    %c0_i32 = arith.constant 0 : i32
    %c0_i32_0 = arith.constant 0 : i32
    %c0_i32_1 = arith.constant 0 : i32
    return %c0_i32, %c0_i32_0 : i32, i32
  }
  func.func @transform_9(%arg0: i32) -> (i32, i32) {
    %c0_i32 = arith.constant 0 : i32
    %c0_i32_0 = arith.constant 0 : i32
    return %arg0, %c0_i32 : i32, i32
  }
}

</mosaic_0001>

<llo_original>
// kernel: concat_mlp_forward.1
$region0: #{concat_mlp_forward.1}
  #allocation0 [shape = 'u32[]', space=smem, size = 0x4, offset = 0x4, fixed_abs, tag = 'smem constant byte address 0x4 - core index']
  #allocation1 [shape = 'u32[144,128]{1,0:T(1,128)}', space=vmem, size = 0x12000, scoped, tag = 'internal scratch']
  %s0 = inlined_call_operand.vmem [shape: f32[48,32], index: 0, kind: input, shape index: {}]
  %s1 = inlined_call_operand.vmem [shape: f32[48,32], index: 1, kind: input, shape index: {}]
  %s2 = inlined_call_operand.hbm [shape: bf16[32,128], index: 2, kind: input, shape index: {}]
  %s3 = inlined_call_operand.hbm [shape: bf16[32,128], index: 3, kind: input, shape index: {}]
  %s4 = inlined_call_operand.vmem [shape: f32[1,128], index: 4, kind: input, shape index: {}]
  %s5 = inlined_call_operand.vmem [shape: bf16[128,128], index: 5, kind: input, shape index: {}]
  %s6 = inlined_call_operand.vmem [shape: f32[1,128], index: 6, kind: input, shape index: {}]
  %s7 = inlined_call_operand.vmem [shape: bf16[128,128], index: 7, kind: input, shape index: {}]
  %s8 = inlined_call_operand.vmem [shape: f32[1,128], index: 8, kind: input, shape index: {}]
  %s9 = inlined_call_operand.vmem [shape: f32[48,128], index: 9, kind: output, shape index: {}]
  %s10 = sld [smem:[#allocation0]]
  $region77: #{concat_mlp_forward.1} parent=0
    _
  %s12 = ssub.s32 1, %s10
  %s13 = scalar_select 0, %s12, %s10
  $region1: #{concat_mlp_forward.1} parent=0
    #allocation2 [shape = 'u8[8192]{0}', space=vmem, size = 0x2000, scoped, tag = 'input window, operand 2, single buffered']
    #allocation3 [shape = 's32[2]{0}', space=sflag, size = 0x8, scoped, tag = 'scoped memory for concat_mlp_forward.1']
    #allocation4 [shape = 'u8[8192]{0}', space=vmem, size = 0x2000, scoped, tag = 'input window, operand 3, single buffered']
    #allocation5 [shape = 's32[1]{0}', space=sflag, size = 0x4, scoped, tag = 'scoped memory for concat_mlp_forward.1']
    %14 = vsyncpa [#allocation3], 0
    %15 = vsyncpa [#allocation5], 0
    loop: start=0, step=1, limit=5
    $region2: #{concat_mlp_forward.1} parent=1 // loop_pre_header
      _
    $region3: #{concat_mlp_forward.1} parent=1 // loop_header
      %s17 = sphi 0, %s21
      %p18 = scmp.ge.s32.totalorder %s17, 5
      %s27 = sphi 0, %s29
      %s30 = sphi 0, %s27
      %s31 = sphi 0, %s30
      %s47 = sphi 0, %s31
      %s53 = sphi 0, %s55
      %s56 = sphi 0, %s53
      %s57 = sphi 0, %s56
      %s73 = sphi 0, %s57
      %s77 = sphi 0, %s77
      %s79 = sphi 0, %s77
      %s80 = sphi 0, %s79
      %s94 = sphi 0, %s80
      %s98 = sphi 0, %s98
      %s100 = sphi 0, %s98
      %s101 = sphi 0, %s100
      %s115 = sphi 0, %s101
      %s119 = sphi 0, %s119
      %s121 = sphi 0, %s119
      %s122 = sphi 0, %s121
      %s136 = sphi 0, %s122
      %s140 = sphi 0, %s140
      %s142 = sphi 0, %s140
      %s143 = sphi 0, %s142
      %s157 = sphi 0, %s143
      %s161 = sphi 0, %s161
      %s163 = sphi 0, %s161
      %s164 = sphi 0, %s163
      %s178 = sphi 0, %s164
      %s182 = sphi 0, %s182
      %s184 = sphi 0, %s182
      %s185 = sphi 0, %s184
      %s199 = sphi 0, %s185
      %s203 = sphi 0, %s203
      %s205 = sphi 0, %s203
      %s206 = sphi 0, %s205
      %s220 = sphi 0, %s206
      %s226 = sphi 0, %s228
      %s229 = sphi 0, %s226
      %s230 = sphi 0, %s229
      %s246 = sphi 0, %s230
    $region4: #{concat_mlp_forward.1} parent=1 // loop_header_branch
      %20 = sbr.rel (%p18) target = $region8
    $region5: #{concat_mlp_forward.1} parent=1 // loop_body
      %s22 = ssub.s32 %s17, 1
      %s23 = ssub.s32 %s17, 2
      %s24 = sadd.s32 %s17, 1
      %s25 = ssub.s32 %s17, %s24
      %p26 = scmp.eq.s32.totalorder %s25, 0
      %s28 = sadd.s32 %s27, 1
      %s29 = scalar_select %p26, %s27, %s28
      %p32 = pneg %p26
      %p33 = scmp.eq.s32.totalorder %s17, 2
      %p34 = por %p32, %p33
      %p35 = scmp.ne.s32.totalorder %s27, %s30
      %p36 = scmp.eq.s32.totalorder %s17, 0
      %p37 = por %p35, %p36
      %p38 = scmp.ne.s32.totalorder %s27, %s30
      %p39 = scmp.eq.s32.totalorder %s22, 2
      %p40 = por %p38, %p39
      %p41 = scmp.ne.s32.totalorder %s30, %s31
      %p42 = scmp.eq.s32.totalorder %s22, 0
      %p43 = por %p41, %p42
      %p44 = scmp.ne.s32.totalorder %s30, %s31
      %p45 = scmp.eq.s32.totalorder %s23, 2
      %p46 = por %p44, %p45
      %p48 = scmp.ne.s32.totalorder %s31, %s47
      %p49 = scmp.eq.s32.totalorder %s23, 0
      %p50 = por %p48, %p49
      %s51 = ssub.s32 %s17, %s24
      %p52 = scmp.eq.s32.totalorder %s51, 0
      %s54 = sadd.s32 %s53, 1
      %s55 = scalar_select %p52, %s53, %s54
      %p58 = pneg %p52
      %p59 = scmp.eq.s32.totalorder %s17, 2
      %p60 = por %p58, %p59
      %p61 = scmp.ne.s32.totalorder %s53, %s56
      %p62 = scmp.eq.s32.totalorder %s17, 0
      %p63 = por %p61, %p62
      %p64 = scmp.ne.s32.totalorder %s53, %s56
      %p65 = scmp.eq.s32.totalorder %s22, 2
      %p66 = por %p64, %p65
      %p67 = scmp.ne.s32.totalorder %s56, %s57
      %p68 = scmp.eq.s32.totalorder %s22, 0
      %p69 = por %p67, %p68
      %p70 = scmp.ne.s32.totalorder %s56, %s57
      %p71 = scmp.eq.s32.totalorder %s23, 2
      %p72 = por %p70, %p71
      %p74 = scmp.ne.s32.totalorder %s57, %s73
      %p75 = scmp.eq.s32.totalorder %s23, 0
      %p76 = por %p74, %p75
      %s78 = sadd.s32 %s77, 1
      %p81 = scmp.eq.s32.totalorder %s17, 2
      %p82 = scmp.ne.s32.totalorder %s77, %s79
      %p83 = scmp.eq.s32.totalorder %s17, 0
      %p84 = por %p82, %p83
      %p85 = scmp.ne.s32.totalorder %s77, %s79
      %p86 = scmp.eq.s32.totalorder %s22, 2
      %p87 = por %p85, %p86
      %p88 = scmp.ne.s32.totalorder %s79, %s80
      %p89 = scmp.eq.s32.totalorder %s22, 0
      %p90 = por %p88, %p89
      %p91 = scmp.ne.s32.totalorder %s79, %s80
      %p92 = scmp.eq.s32.totalorder %s23, 2
      %p93 = por %p91, %p92
      %p95 = scmp.ne.s32.totalorder %s80, %s94
      %p96 = scmp.eq.s32.totalorder %s23, 0
      %p97 = por %p95, %p96
      %s99 = sadd.s32 %s98, 1
      %p102 = scmp.eq.s32.totalorder %s17, 2
      %p103 = scmp.ne.s32.totalorder %s98, %s100
      %p104 = scmp.eq.s32.totalorder %s17, 0
      %p105 = por %p103, %p104
      %p106 = scmp.ne.s32.totalorder %s98, %s100
      %p107 = scmp.eq.s32.totalorder %s22, 2
      %p108 = por %p106, %p107
      %p109 = scmp.ne.s32.totalorder %s100, %s101
      %p110 = scmp.eq.s32.totalorder %s22, 0
      %p111 = por %p109, %p110
      %p112 = scmp.ne.s32.totalorder %s100, %s101
      %p113 = scmp.eq.s32.totalorder %s23, 2
      %p114 = por %p112, %p113
      %p116 = scmp.ne.s32.totalorder %s101, %s115
      %p117 = scmp.eq.s32.totalorder %s23, 0
      %p118 = por %p116, %p117
      %s120 = sadd.s32 %s119, 1
      %p123 = scmp.eq.s32.totalorder %s17, 2
      %p124 = scmp.ne.s32.totalorder %s119, %s121
      %p125 = scmp.eq.s32.totalorder %s17, 0
      %p126 = por %p124, %p125
      %p127 = scmp.ne.s32.totalorder %s119, %s121
      %p128 = scmp.eq.s32.totalorder %s22, 2
      %p129 = por %p127, %p128
      %p130 = scmp.ne.s32.totalorder %s121, %s122
      %p131 = scmp.eq.s32.totalorder %s22, 0
      %p132 = por %p130, %p131
      %p133 = scmp.ne.s32.totalorder %s121, %s122
      %p134 = scmp.eq.s32.totalorder %s23, 2
      %p135 = por %p133, %p134
      %p137 = scmp.ne.s32.totalorder %s122, %s136
      %p138 = scmp.eq.s32.totalorder %s23, 0
      %p139 = por %p137, %p138
      %s141 = sadd.s32 %s140, 1
      %p144 = scmp.eq.s32.totalorder %s17, 2
      %p145 = scmp.ne.s32.totalorder %s140, %s142
      %p146 = scmp.eq.s32.totalorder %s17, 0
      %p147 = por %p145, %p146
      %p148 = scmp.ne.s32.totalorder %s140, %s142
      %p149 = scmp.eq.s32.totalorder %s22, 2
      %p150 = por %p148, %p149
      %p151 = scmp.ne.s32.totalorder %s142, %s143
      %p152 = scmp.eq.s32.totalorder %s22, 0
      %p153 = por %p151, %p152
      %p154 = scmp.ne.s32.totalorder %s142, %s143
      %p155 = scmp.eq.s32.totalorder %s23, 2
      %p156 = por %p154, %p155
      %p158 = scmp.ne.s32.totalorder %s143, %s157
      %p159 = scmp.eq.s32.totalorder %s23, 0
      %p160 = por %p158, %p159
      %s162 = sadd.s32 %s161, 1
      %p165 = scmp.eq.s32.totalorder %s17, 2
      %p166 = scmp.ne.s32.totalorder %s161, %s163
      %p167 = scmp.eq.s32.totalorder %s17, 0
      %p168 = por %p166, %p167
      %p169 = scmp.ne.s32.totalorder %s161, %s163
      %p170 = scmp.eq.s32.totalorder %s22, 2
      %p171 = por %p169, %p170
      %p172 = scmp.ne.s32.totalorder %s163, %s164
      %p173 = scmp.eq.s32.totalorder %s22, 0
      %p174 = por %p172, %p173
      %p175 = scmp.ne.s32.totalorder %s163, %s164
      %p176 = scmp.eq.s32.totalorder %s23, 2
      %p177 = por %p175, %p176
      %p179 = scmp.ne.s32.totalorder %s164, %s178
      %p180 = scmp.eq.s32.totalorder %s23, 0
      %p181 = por %p179, %p180
      %s183 = sadd.s32 %s182, 1
      %p186 = scmp.eq.s32.totalorder %s17, 2
      %p187 = scmp.ne.s32.totalorder %s182, %s184
      %p188 = scmp.eq.s32.totalorder %s17, 0
      %p189 = por %p187, %p188
      %p190 = scmp.ne.s32.totalorder %s182, %s184
      %p191 = scmp.eq.s32.totalorder %s22, 2
      %p192 = por %p190, %p191
      %p193 = scmp.ne.s32.totalorder %s184, %s185
      %p194 = scmp.eq.s32.totalorder %s22, 0
      %p195 = por %p193, %p194
      %p196 = scmp.ne.s32.totalorder %s184, %s185
      %p197 = scmp.eq.s32.totalorder %s23, 2
      %p198 = por %p196, %p197
      %p200 = scmp.ne.s32.totalorder %s185, %s199
      %p201 = scmp.eq.s32.totalorder %s23, 0
      %p202 = por %p200, %p201
      %s204 = sadd.s32 %s203, 1
      %p207 = scmp.eq.s32.totalorder %s17, 2
      %p208 = scmp.ne.s32.totalorder %s203, %s205
      %p209 = scmp.eq.s32.totalorder %s17, 0
      %p210 = por %p208, %p209
      %p211 = scmp.ne.s32.totalorder %s203, %s205
      %p212 = scmp.eq.s32.totalorder %s22, 2
      %p213 = por %p211, %p212
      %p214 = scmp.ne.s32.totalorder %s205, %s206
      %p215 = scmp.eq.s32.totalorder %s22, 0
      %p216 = por %p214, %p215
      %p217 = scmp.ne.s32.totalorder %s205, %s206
      %p218 = scmp.eq.s32.totalorder %s23, 2
      %p219 = por %p217, %p218
      %p221 = scmp.ne.s32.totalorder %s206, %s220
      %p222 = scmp.eq.s32.totalorder %s23, 0
      %p223 = por %p221, %p222
      %s224 = ssub.s32 %s17, %s24
      %p225 = scmp.eq.s32.totalorder %s224, 0
      %s227 = sadd.s32 %s226, 1
      %s228 = scalar_select %p225, %s226, %s227
      %p231 = pneg %p225
      %p232 = scmp.eq.s32.totalorder %s17, 2
      %p233 = por %p231, %p232
      %p234 = scmp.ne.s32.totalorder %s226, %s229
      %p235 = scmp.eq.s32.totalorder %s17, 0
      %p236 = por %p234, %p235
      %p237 = scmp.ne.s32.totalorder %s226, %s229
      %p238 = scmp.eq.s32.totalorder %s22, 2
      %p239 = por %p237, %p238
      %p240 = scmp.ne.s32.totalorder %s229, %s230
      %p241 = scmp.eq.s32.totalorder %s22, 0
      %p242 = por %p240, %p241
      %p243 = scmp.ne.s32.totalorder %s229, %s230
      %p244 = scmp.eq.s32.totalorder %s23, 2
      %p245 = por %p243, %p244
      %p247 = scmp.ne.s32.totalorder %s230, %s246
      %p248 = scmp.eq.s32.totalorder %s23, 0
      %p249 = por %p247, %p248
      %p250 = scmp.le.s32.totalorder 1, %s17
      %p251 = scmp.lt.s32.totalorder %s17, 4
      %p252 = pnand %p250, %p251
      %p253 = pneg %p252
      // Predicated region
      $region9: #{concat_mlp_forward.1} parent=5 // pred_check
        _
      $region10: #{concat_mlp_forward.1} parent=5 // pred_check_branch
        %255 = sbr.rel (%p252) target = $region12
      $region11: #{concat_mlp_forward.1} parent=5 // pred_region
        %s256 = ssub.s32 %s17, 1
        // Predicated region
        $region13: #{concat_mlp_forward.1} parent=11 // pred_check
          %p257 = pneg %p90
        $region14: #{concat_mlp_forward.1} parent=11 // pred_check_branch
          %259 = sbr.rel (%p257) target = $region16
        $region15: #{concat_mlp_forward.1} parent=11 // pred_region
          %s261 = ssub.s32 256, 256
          %262 = vsyncadd [#allocation3], %s261
          %s263 = sshll.u32 [#allocation2], 4
          %s264 = int_to_ptr.vmem [resolvable:$true] %s263
          %269 = dma.hbm_to_vmem [thread:$0]  %s2, 256, %s264, [#allocation3], 64, 64, 4
        $region16: #{concat_mlp_forward.1} parent=11 // pred_fallthru
          _
        // Predicated region
        $region17: #{concat_mlp_forward.1} parent=11 // pred_check
          %p270 = pneg %p111
        $region18: #{concat_mlp_forward.1} parent=11 // pred_check_branch
          %272 = sbr.rel (%p270) target = $region20
        $region19: #{concat_mlp_forward.1} parent=11 // pred_region
          %s274 = ssub.s32 256, 256
          %275 = vsyncadd [#allocation5], %s274
          %s276 = sshll.u32 [#allocation4], 4
          %s277 = int_to_ptr.vmem [resolvable:$true] %s276
          %282 = dma.hbm_to_vmem [thread:$0]  %s3, 256, %s277, [#allocation5], 64, 64, 4
        $region20: #{concat_mlp_forward.1} parent=11 // pred_fallthru
          _
        // Predicated region
        $region21: #{concat_mlp_forward.1} parent=11 // pred_check
          %p283 = pneg %p132
        $region22: #{concat_mlp_forward.1} parent=11 // pred_check_branch
          %285 = sbr.rel (%p283) target = $region24
        $region23: #{concat_mlp_forward.1} parent=11 // pred_region
          _
        $region24: #{concat_mlp_forward.1} parent=11 // pred_fallthru
          _
        // Predicated region
        $region25: #{concat_mlp_forward.1} parent=11 // pred_check
          %p286 = pneg %p153
        $region26: #{concat_mlp_forward.1} parent=11 // pred_check_branch
          %288 = sbr.rel (%p286) target = $region28
        $region27: #{concat_mlp_forward.1} parent=11 // pred_region
          _
        $region28: #{concat_mlp_forward.1} parent=11 // pred_fallthru
          _
        // Predicated region
        $region29: #{concat_mlp_forward.1} parent=11 // pred_check
          %p289 = pneg %p174
        $region30: #{concat_mlp_forward.1} parent=11 // pred_check_branch
          %291 = sbr.rel (%p289) target = $region32
        $region31: #{concat_mlp_forward.1} parent=11 // pred_region
          _
        $region32: #{concat_mlp_forward.1} parent=11 // pred_fallthru
          _
        // Predicated region
        $region33: #{concat_mlp_forward.1} parent=11 // pred_check
          %p292 = pneg %p195
        $region34: #{concat_mlp_forward.1} parent=11 // pred_check_branch
          %294 = sbr.rel (%p292) target = $region36
        $region35: #{concat_mlp_forward.1} parent=11 // pred_region
          _
        $region36: #{concat_mlp_forward.1} parent=11 // pred_fallthru
          _
        // Predicated region
        $region37: #{concat_mlp_forward.1} parent=11 // pred_check
          %p295 = pneg %p216
        $region38: #{concat_mlp_forward.1} parent=11 // pred_check_branch
          %297 = sbr.rel (%p295) target = $region40
        $region39: #{concat_mlp_forward.1} parent=11 // pred_region
          _
        $region40: #{concat_mlp_forward.1} parent=11 // pred_fallthru
          _
      $region12: #{concat_mlp_forward.1} parent=5 // pred_fallthru
        _
      %p298 = scmp.lt.s32.totalorder %s17, 3
      // Predicated region
      $region41: #{concat_mlp_forward.1} parent=5 // pred_check
        %p299 = pneg %p298
      $region42: #{concat_mlp_forward.1} parent=5 // pred_check_branch
        %301 = sbr.rel (%p299) target = $region44
      $region43: #{concat_mlp_forward.1} parent=5 // pred_region
        // Predicated region
        $region45: #{concat_mlp_forward.1} parent=43 // pred_check
          %p302 = pneg %p37
        $region46: #{concat_mlp_forward.1} parent=43 // pred_check_branch
          %304 = sbr.rel (%p302) target = $region48
        $region47: #{concat_mlp_forward.1} parent=43 // pred_region
          %s305 = smul.u32 2, %s17
          %p306 = scmp.lt.s32.totalorder %s305, 5
          %s307 = scalar_select %p306, %s305, 5
          %s308 = smul.addr %s307, 8
          %s309 = scalar_lea.vmem %s0, %s308
          %s310 = smul.u32 2, %s17
        $region48: #{concat_mlp_forward.1} parent=43 // pred_fallthru
          _
        // Predicated region
        $region49: #{concat_mlp_forward.1} parent=43 // pred_check
          %p311 = pneg %p63
        $region50: #{concat_mlp_forward.1} parent=43 // pred_check_branch
          %313 = sbr.rel (%p311) target = $region52
        $region51: #{concat_mlp_forward.1} parent=43 // pred_region
          %s314 = smul.u32 2, %s17
          %p315 = scmp.lt.s32.totalorder %s314, 5
          %s316 = scalar_select %p315, %s314, 5
          %s317 = smul.addr %s316, 8
          %s318 = scalar_lea.vmem %s1, %s317
          %s319 = smul.u32 2, %s17
        $region52: #{concat_mlp_forward.1} parent=43 // pred_fallthru
          _
      $region44: #{concat_mlp_forward.1} parent=5 // pred_fallthru
        _
      %p320 = scmp.le.s32.totalorder 1, %s17
      %p321 = scmp.lt.s32.totalorder %s17, 4
      %p322 = pnand %p320, %p321
      %p323 = pneg %p322
      // Predicated region
      $region53: #{concat_mlp_forward.1} parent=5 // pred_check
        _
      $region54: #{concat_mlp_forward.1} parent=5 // pred_check_branch
        %325 = sbr.rel (%p322) target = $region56
      $region55: #{concat_mlp_forward.1} parent=5 // pred_region
        %s326 = ssub.s32 %s17, 1
        // Predicated region
        $region57: #{concat_mlp_forward.1} parent=55 // pred_check
          %p327 = pneg %p90
        $region58: #{concat_mlp_forward.1} parent=55 // pred_check_branch
          %329 = sbr.rel (%p327) target = $region60
        $region59: #{concat_mlp_forward.1} parent=55 // pred_region
          %330 = dma.done [#allocation3], 256
        $region60: #{concat_mlp_forward.1} parent=55 // pred_fallthru
          _
        // Predicated region
        $region61: #{concat_mlp_forward.1} parent=55 // pred_check
          %p331 = pneg %p111
        $region62: #{concat_mlp_forward.1} parent=55 // pred_check_branch
          %333 = sbr.rel (%p331) target = $region64
        $region63: #{concat_mlp_forward.1} parent=55 // pred_region
          %334 = dma.done [#allocation5], 256
        $region64: #{concat_mlp_forward.1} parent=55 // pred_fallthru
          _
        %s335 = smul.u32 2, %s22
        %p336 = scmp.lt.s32.totalorder %s335, 5
        %s337 = scalar_select %p336, %s335, 5
        %s338 = smul.addr %s337, 8
        %s339 = scalar_lea.vmem %s0, %s338
        %p340 = pneg %p43
        %p341 = pneg %p40
        %s342 = smul.u32 2, %s22
        %p343 = scmp.lt.s32.totalorder %s342, 5
        %s344 = scalar_select %p343, %s342, 5
        %s345 = smul.addr %s344, 8
        %s346 = scalar_lea.vmem %s1, %s345
        %p347 = pneg %p69
        %p348 = pneg %p66
        %p349 = pneg %p90
        %p350 = pneg %p87
        %p351 = pneg %p111
        %p352 = pneg %p108
        %p353 = pneg %p132
        %p354 = pneg %p129
        %p355 = pneg %p153
        %p356 = pneg %p150
        %p357 = pneg %p174
        %p358 = pneg %p171
        %p359 = pneg %p195
        %p360 = pneg %p192
        %p361 = pneg %p216
        %p362 = pneg %p213
        %p363 = pneg %p242
        %p364 = pneg %p239
        %s365 = smul.u32 2, %s22
        %p366 = scmp.lt.s32.totalorder %s365, 5
        %s367 = scalar_select %p366, %s365, 5
        %s368 = smul.addr %s367, 8
        %s369 = scalar_lea.vmem %s9, %s368
        %s370 = smul.u32 2, %s22
        %p371 = scmp.lt.s32.totalorder %s370, 5
        %s372 = scalar_select %p371, %s370, 5
        %s373 = smul.addr %s372, 8
        %s374 = scalar_lea.vmem %s0, %s373
        %s375 = smul.u32 2, %s22
        %s376 = smul.u32 2, %s22
        %p377 = scmp.lt.s32.totalorder %s376, 5
        %s378 = scalar_select %p377, %s376, 5
        %s379 = smul.addr %s378, 8
        %s380 = scalar_lea.vmem %s1, %s379
        %s381 = smul.u32 2, %s22
        %s382 = smul.u32 2, %s22
        %p383 = scmp.lt.s32.totalorder %s382, 5
        %s384 = scalar_select %p383, %s382, 5
        %s385 = smul.addr %s384, 8
        %s386 = scalar_lea.vmem %s9, %s385
        %s387 = smul.u32 2, %s22
        %v389 = vld [vmem:[%s374] sm:$0xff]
        %v390 = vld [vmem:[%s374 + $0x8] sm:$0xff]
        %v391 = vpack.c.bf16 %v390, %v389
        %v392 = vld [vmem:[#allocation2] sm:$0xf]
        %v393 = vld [vmem:[#allocation2 + $0x4] sm:$0xf]
        %v394 = vld [vmem:[#allocation2 + $0x8] sm:$0xf]
        %v395 = vld [vmem:[#allocation2 + $0xc] sm:$0xf]
        %v396 = vld [vmem:[%s380] sm:$0xff]
        %v397 = vld [vmem:[%s380 + $0x8] sm:$0xff]
        %v398 = vpack.c.bf16 %v397, %v396
        %v399 = vld [vmem:[#allocation4] sm:$0xf]
        %v400 = vld [vmem:[#allocation4 + $0x4] sm:$0xf]
        %v401 = vld [vmem:[#allocation4 + $0x8] sm:$0xf]
        %v402 = vld [vmem:[#allocation4 + $0xc] sm:$0xf]
        %v407 = vunpack.c.l.b16 %v399
        %v408 = vunpack.c.l.b16 %v400
        %v409 = vunpack.c.l.b16 %v401
        %v410 = vunpack.c.l.b16 %v402
        %v411 = vpack.c.b16 %v408, %v407
        %v412 = vpack.c.b16 %v410, %v409
        %vm415 = vcmask 261120
        %v417 = vsel %vm415, %v398, 0
        %419 = vmatprep.subr.bf16.mxu0 0
        %420 = vmatpush1.bf16.msra.mxu0 0
        %421 = vmatprep.subr.bf16.mxu0 0
        %422 = vmatpush1.bf16.msra.mxu0 0
        %423 = vmatprep.subr.bf16.mxu0 0
        %424 = vmatpush1.bf16.msra.mxu0 0
        %425 = vmatprep.subr.bf16.mxu0 0
        %426 = vmatpush1.bf16.msra.mxu0 0
        %427 = vmatprep.subr.bf16.mxu0 0
        %428 = vmatpush1.bf16.msra.mxu0 0
        %429 = vmatprep.subr.bf16.mxu0 0
        %430 = vmatpush1.bf16.msra.mxu0 0
        %431 = vmatprep.subr.bf16.mxu0 0
        %432 = vmatpush1.bf16.msra.mxu0 %v412
        %433 = vmatprep.subr.bf16.mxu0 0
        %434 = vmatpush1.bf16.msra.mxu0 %v411
        %435 = vmatprep.subr.bf16.mxu0 0
        %436 = vmatpush2.bf16.msra.mxu0 0
        %437 = vmatprep.subr.bf16.mxu0 0
        %438 = vmatpush2.bf16.msra.mxu0 0
        %439 = vmatprep.subr.bf16.mxu0 0
        %440 = vmatpush2.bf16.msra.mxu0 0
        %441 = vmatprep.subr.bf16.mxu0 0
        %442 = vmatpush2.bf16.msra.mxu0 0
        %443 = vmatprep.subr.bf16.mxu0 0
        %444 = vmatpush2.bf16.msra.mxu0 0
        %445 = vmatprep.subr.bf16.mxu0 0
        %446 = vmatpush2.bf16.msra.mxu0 0
        %447 = vmatprep.subr.bf16.mxu0 0
        %448 = vmatpush2.bf16.msra.mxu0 0
        %449 = vmatprep.subr.bf16.mxu0 0
        %450 = vmatpush2.bf16.msra.mxu0 0
        %451 = vmatprep.mubr.bf16.mxu0 0
        %452 = vmatmul.mubr.bf16.gmra.mxu0 %v417
        %v453 = vpop.f32.mrf.mxu0
        %v454 = vadd.f32 0.0, %v453
        %v455 = vpop.f32.mrf.mxu0
        %v456 = vpop.f32.mrf.mxu0
        %v457 = vadd.f32 0.0, %v456
        %v458 = vpop.f32.mrf.mxu0
        %459 = vdwg.mxu0
        %v464 = vunpack.c.l.b16 %v392
        %v465 = vunpack.c.l.b16 %v393
        %v466 = vunpack.c.l.b16 %v394
        %v467 = vunpack.c.l.b16 %v395
        %v468 = vpack.c.b16 %v465, %v464
        %v469 = vpack.c.b16 %v467, %v466
        %v473 = vsel %vm415, %v391, 0
        %475 = vmatprep.subr.bf16.mxu0 0
        %476 = vmatpush1.bf16.msra.mxu0 0
        %477 = vmatprep.subr.bf16.mxu0 0
        %478 = vmatpush1.bf16.msra.mxu0 0
        %479 = vmatprep.subr.bf16.mxu0 0
        %480 = vmatpush1.bf16.msra.mxu0 0
        %481 = vmatprep.subr.bf16.mxu0 0
        %482 = vmatpush1.bf16.msra.mxu0 0
        %483 = vmatprep.subr.bf16.mxu0 0
        %484 = vmatpush1.bf16.msra.mxu0 0
        %485 = vmatprep.subr.bf16.mxu0 0
        %486 = vmatpush1.bf16.msra.mxu0 0
        %487 = vmatprep.subr.bf16.mxu0 0
        %488 = vmatpush1.bf16.msra.mxu0 %v469
        %489 = vmatprep.subr.bf16.mxu0 0
        %490 = vmatpush1.bf16.msra.mxu0 %v468
        %491 = vmatprep.subr.bf16.mxu0 0
        %492 = vmatpush2.bf16.msra.mxu0 0
        %493 = vmatprep.subr.bf16.mxu0 0
        %494 = vmatpush2.bf16.msra.mxu0 0
        %495 = vmatprep.subr.bf16.mxu0 0
        %496 = vmatpush2.bf16.msra.mxu0 0
        %497 = vmatprep.subr.bf16.mxu0 0
        %498 = vmatpush2.bf16.msra.mxu0 0
        %499 = vmatprep.subr.bf16.mxu0 0
        %500 = vmatpush2.bf16.msra.mxu0 0
        %501 = vmatprep.subr.bf16.mxu0 0
        %502 = vmatpush2.bf16.msra.mxu0 0
        %503 = vmatprep.subr.bf16.mxu0 0
        %504 = vmatpush2.bf16.msra.mxu0 0
        %505 = vmatprep.subr.bf16.mxu0 0
        %506 = vmatpush2.bf16.msra.mxu0 0
        %507 = vmatprep.mubr.bf16.mxu0 0
        %508 = vmatmul.mubr.bf16.gmra.mxu0 %v473
        %v509 = vpop.f32.mrf.mxu0
        %v510 = vadd.f32 %v454, %v509
        %v511 = vpop.f32.mrf.mxu0
        %v512 = vpop.f32.mrf.mxu0
        %v513 = vadd.f32 %v457, %v512
        %v514 = vpop.f32.mrf.mxu0
        %515 = vdwg.mxu0
        %v516 = vld [vmem:[%s4] sm:$0x1]
        %v518 = vlaneseq
        %v519 = vshrl.u32 %v518, 7
        %v520 = vsub.s32 0, %v519
        %v521 = vrot.slane %v516, %v520
        %v523 = vadd.f32 %v510, %v521
        %v524 = vadd.f32 %v513, %v521
        %v525 = vmax.f32 %v523, 0.0
        %v526 = vmax.f32 %v524, 0.0
        %v527 = vpack.c.bf16 %v526, %v525
        %v528 = vld [vmem:[%s5] sm:$0xf]
        %v529 = vld [vmem:[%s5 + $0x4] sm:$0xf]
        %v530 = vld [vmem:[%s5 + $0x8] sm:$0xf]
        %v531 = vld [vmem:[%s5 + $0xc] sm:$0xf]
        %v532 = vld [vmem:[%s5 + $0x10] sm:$0xf]
        %v533 = vld [vmem:[%s5 + $0x14] sm:$0xf]
        %v534 = vld [vmem:[%s5 + $0x18] sm:$0xf]
        %v535 = vld [vmem:[%s5 + $0x1c] sm:$0xf]
        %v536 = vld [vmem:[%s5 + $0x20] sm:$0xf]
        %v537 = vld [vmem:[%s5 + $0x24] sm:$0xf]
        %v538 = vld [vmem:[%s5 + $0x28] sm:$0xf]
        %v539 = vld [vmem:[%s5 + $0x2c] sm:$0xf]
        %v540 = vld [vmem:[%s5 + $0x30] sm:$0xf]
        %v541 = vld [vmem:[%s5 + $0x34] sm:$0xf]
        %v542 = vld [vmem:[%s5 + $0x38] sm:$0xf]
        %v543 = vld [vmem:[%s5 + $0x3c] sm:$0xf]
        %v544 = vld [vmem:[%s6] sm:$0x1]
        %v546 = vlaneseq
        %v547 = vshrl.u32 %v546, 7
        %v548 = vsub.s32 0, %v547
        %v549 = vrot.slane %v544, %v548
        %v567 = vunpack.c.l.b16 %v528
        %v568 = vunpack.c.l.b16 %v529
        %v569 = vunpack.c.l.b16 %v530
        %v570 = vunpack.c.l.b16 %v531
        %v571 = vunpack.c.l.b16 %v532
        %v572 = vunpack.c.l.b16 %v533
        %v573 = vunpack.c.l.b16 %v534
        %v574 = vunpack.c.l.b16 %v535
        %v575 = vunpack.c.l.b16 %v536
        %v576 = vunpack.c.l.b16 %v537
        %v577 = vunpack.c.l.b16 %v538
        %v578 = vunpack.c.l.b16 %v539
        %v579 = vunpack.c.l.b16 %v540
        %v580 = vunpack.c.l.b16 %v541
        %v581 = vunpack.c.l.b16 %v542
        %v582 = vunpack.c.l.b16 %v543
        %v583 = vpack.c.b16 %v568, %v567
        %v584 = vpack.c.b16 %v570, %v569
        %v585 = vpack.c.b16 %v572, %v571
        %v586 = vpack.c.b16 %v574, %v573
        %v587 = vpack.c.b16 %v576, %v575
        %v588 = vpack.c.b16 %v578, %v577
        %v589 = vpack.c.b16 %v580, %v579
        %v590 = vpack.c.b16 %v582, %v581
        %599 = vmatprep.subr.bf16.mxu0 0
        %600 = vmatpush1.bf16.msra.mxu0 %v590
        %601 = vmatprep.subr.bf16.mxu0 0
        %602 = vmatpush1.bf16.msra.mxu0 %v589
        %603 = vmatprep.subr.bf16.mxu0 0
        %604 = vmatpush1.bf16.msra.mxu0 %v588
        %605 = vmatprep.subr.bf16.mxu0 0
        %606 = vmatpush1.bf16.msra.mxu0 %v587
        %607 = vmatprep.subr.bf16.mxu0 0
        %608 = vmatpush1.bf16.msra.mxu0 %v586
        %609 = vmatprep.subr.bf16.mxu0 0
        %610 = vmatpush1.bf16.msra.mxu0 %v585
        %611 = vmatprep.subr.bf16.mxu0 0
        %612 = vmatpush1.bf16.msra.mxu0 %v584
        %613 = vmatprep.subr.bf16.mxu0 0
        %614 = vmatpush1.bf16.msra.mxu0 %v583
        %615 = vmatprep.subr.bf16.mxu0 0
        %616 = vmatpush2.bf16.msra.mxu0 0
        %617 = vmatprep.subr.bf16.mxu0 0
        %618 = vmatpush2.bf16.msra.mxu0 0
        %619 = vmatprep.subr.bf16.mxu0 0
        %620 = vmatpush2.bf16.msra.mxu0 0
        %621 = vmatprep.subr.bf16.mxu0 0
        %622 = vmatpush2.bf16.msra.mxu0 0
        %623 = vmatprep.subr.bf16.mxu0 0
        %624 = vmatpush2.bf16.msra.mxu0 0
        %625 = vmatprep.subr.bf16.mxu0 0
        %626 = vmatpush2.bf16.msra.mxu0 0
        %627 = vmatprep.subr.bf16.mxu0 0
        %628 = vmatpush2.bf16.msra.mxu0 0
        %629 = vmatprep.subr.bf16.mxu0 0
        %630 = vmatpush2.bf16.msra.mxu0 0
        %631 = vmatprep.mubr.bf16.mxu0 0
        %632 = vmatmul.mubr.bf16.gmra.mxu0 %v527
        %v633 = vpop.f32.mrf.mxu0
        %v634 = vadd.f32 %v549, %v633
        %v635 = vpop.f32.mrf.mxu0
        %v636 = vpop.f32.mrf.mxu0
        %v637 = vadd.f32 %v549, %v636
        %v638 = vpop.f32.mrf.mxu0
        %639 = vdwg.mxu0
        %v640 = vmax.f32 %v634, 0.0
        %v641 = vmax.f32 %v637, 0.0
        %v642 = vpack.c.bf16 %v641, %v640
        %v643 = vld [vmem:[%s7] sm:$0xf]
        %v644 = vld [vmem:[%s7 + $0x4] sm:$0xf]
        %v645 = vld [vmem:[%s7 + $0x8] sm:$0xf]
        %v646 = vld [vmem:[%s7 + $0xc] sm:$0xf]
        %v647 = vld [vmem:[%s7 + $0x10] sm:$0xf]
        %v648 = vld [vmem:[%s7 + $0x14] sm:$0xf]
        %v649 = vld [vmem:[%s7 + $0x18] sm:$0xf]
        %v650 = vld [vmem:[%s7 + $0x1c] sm:$0xf]
        %v651 = vld [vmem:[%s7 + $0x20] sm:$0xf]
        %v652 = vld [vmem:[%s7 + $0x24] sm:$0xf]
        %v653 = vld [vmem:[%s7 + $0x28] sm:$0xf]
        %v654 = vld [vmem:[%s7 + $0x2c] sm:$0xf]
        %v655 = vld [vmem:[%s7 + $0x30] sm:$0xf]
        %v656 = vld [vmem:[%s7 + $0x34] sm:$0xf]
        %v657 = vld [vmem:[%s7 + $0x38] sm:$0xf]
        %v658 = vld [vmem:[%s7 + $0x3c] sm:$0xf]
        %v659 = vld [vmem:[%s8] sm:$0x1]
        %v661 = vlaneseq
        %v662 = vshrl.u32 %v661, 7
        %v663 = vsub.s32 0, %v662
        %v664 = vrot.slane %v659, %v663
        %v682 = vunpack.c.l.b16 %v643
        %v683 = vunpack.c.l.b16 %v644
        %v684 = vunpack.c.l.b16 %v645
        %v685 = vunpack.c.l.b16 %v646
        %v686 = vunpack.c.l.b16 %v647
        %v687 = vunpack.c.l.b16 %v648
        %v688 = vunpack.c.l.b16 %v649
        %v689 = vunpack.c.l.b16 %v650
        %v690 = vunpack.c.l.b16 %v651
        %v691 = vunpack.c.l.b16 %v652
        %v692 = vunpack.c.l.b16 %v653
        %v693 = vunpack.c.l.b16 %v654
        %v694 = vunpack.c.l.b16 %v655
        %v695 = vunpack.c.l.b16 %v656
        %v696 = vunpack.c.l.b16 %v657
        %v697 = vunpack.c.l.b16 %v658
        %v698 = vpack.c.b16 %v683, %v682
        %v699 = vpack.c.b16 %v685, %v684
        %v700 = vpack.c.b16 %v687, %v686
        %v701 = vpack.c.b16 %v689, %v688
        %v702 = vpack.c.b16 %v691, %v690
        %v703 = vpack.c.b16 %v693, %v692
        %v704 = vpack.c.b16 %v695, %v694
        %v705 = vpack.c.b16 %v697, %v696
        %714 = vmatprep.subr.bf16.mxu0 0
        %715 = vmatpush1.bf16.msra.mxu0 %v705
        %716 = vmatprep.subr.bf16.mxu0 0
        %717 = vmatpush1.bf16.msra.mxu0 %v704
        %718 = vmatprep.subr.bf16.mxu0 0
        %719 = vmatpush1.bf16.msra.mxu0 %v703
        %720 = vmatprep.subr.bf16.mxu0 0
        %721 = vmatpush1.bf16.msra.mxu0 %v702
        %722 = vmatprep.subr.bf16.mxu0 0
        %723 = vmatpush1.bf16.msra.mxu0 %v701
        %724 = vmatprep.subr.bf16.mxu0 0
        %725 = vmatpush1.bf16.msra.mxu0 %v700
        %726 = vmatprep.subr.bf16.mxu0 0
        %727 = vmatpush1.bf16.msra.mxu0 %v699
        %728 = vmatprep.subr.bf16.mxu0 0
        %729 = vmatpush1.bf16.msra.mxu0 %v698
        %730 = vmatprep.subr.bf16.mxu0 0
        %731 = vmatpush2.bf16.msra.mxu0 0
        %732 = vmatprep.subr.bf16.mxu0 0
        %733 = vmatpush2.bf16.msra.mxu0 0
        %734 = vmatprep.subr.bf16.mxu0 0
        %735 = vmatpush2.bf16.msra.mxu0 0
        %736 = vmatprep.subr.bf16.mxu0 0
        %737 = vmatpush2.bf16.msra.mxu0 0
        %738 = vmatprep.subr.bf16.mxu0 0
        %739 = vmatpush2.bf16.msra.mxu0 0
        %740 = vmatprep.subr.bf16.mxu0 0
        %741 = vmatpush2.bf16.msra.mxu0 0
        %742 = vmatprep.subr.bf16.mxu0 0
        %743 = vmatpush2.bf16.msra.mxu0 0
        %744 = vmatprep.subr.bf16.mxu0 0
        %745 = vmatpush2.bf16.msra.mxu0 0
        %746 = vmatprep.mubr.bf16.mxu0 0
        %747 = vmatmul.mubr.bf16.gmra.mxu0 %v642
        %v748 = vpop.f32.mrf.mxu0
        %v749 = vadd.f32 %v664, %v748
        %v750 = vpop.f32.mrf.mxu0
        %v751 = vpop.f32.mrf.mxu0
        %v752 = vadd.f32 %v664, %v751
        %v753 = vpop.f32.mrf.mxu0
        %754 = vdwg.mxu0
        %755 = vst [vmem:[%s386] sm:$0xff] %v749
        %756 = vst [vmem:[%s386 + $0x8] sm:$0xff] %v752
        %s757 = smul.u32 2, %s22
        %p758 = scmp.lt.s32.totalorder %s757, 5
        %s759 = scalar_select %p758, %s757, 5
        %s760 = smul.addr %s759, 8
        %s761 = scalar_lea.vmem %s9, %s760
        // Predicated region
        $region65: #{concat_mlp_forward.1} parent=55 // pred_check
          %p762 = pneg %p239
        $region66: #{concat_mlp_forward.1} parent=55 // pred_check_branch
          %764 = sbr.rel (%p762) target = $region68
        $region67: #{concat_mlp_forward.1} parent=55 // pred_region
          %s765 = smul.u32 2, %s22
        $region68: #{concat_mlp_forward.1} parent=55 // pred_fallthru
          _
      $region56: #{concat_mlp_forward.1} parent=5 // pred_fallthru
        _
      %p766 = scmp.le.s32.totalorder 2, %s17
      // Predicated region
      $region69: #{concat_mlp_forward.1} parent=5 // pred_check
        %p767 = pneg %p766
      $region70: #{concat_mlp_forward.1} parent=5 // pred_check_branch
        %769 = sbr.rel (%p767) target = $region72
      $region71: #{concat_mlp_forward.1} parent=5 // pred_region
        %s770 = ssub.s32 %s17, 2
        // Predicated region
        $region73: #{concat_mlp_forward.1} parent=71 // pred_check
          %p771 = pneg %p245
        $region74: #{concat_mlp_forward.1} parent=71 // pred_check_branch
          %773 = sbr.rel (%p771) target = $region76
        $region75: #{concat_mlp_forward.1} parent=71 // pred_region
          %s774 = smul.u32 2, %s23
          %p775 = scmp.lt.s32.totalorder %s774, 5
          %s776 = scalar_select %p775, %s774, 5
          %s777 = smul.addr %s776, 8
          %s778 = scalar_lea.vmem %s9, %s777
        $region76: #{concat_mlp_forward.1} parent=71 // pred_fallthru
          _
      $region72: #{concat_mlp_forward.1} parent=5 // pred_fallthru
        _
    $region6: #{concat_mlp_forward.1} parent=1 // loop_footer
      %s21 = sadd.s32 1, %s17
    $region7: #{concat_mlp_forward.1} parent=1 // loop_footer_branch
      %16 = sbr.rel target = $region3
    $region8: #{concat_mlp_forward.1} parent=1 // loop_exit
      _
    %779 = vsyncpa [#allocation3], 1
    %s780 = scalar_lea.sflag [#allocation3], 1
    %781 = vsyncpa %s780, 1
    %782 = vsyncpa [#allocation5], 1

</llo_original>
